<compile_context>
chip_gen: v6e
topology: v6e:2x2x1
jax: 0.10.0
libtpu: 0.0.40
codegen_flags: <defaults>
</compile_context>

<pallas_src>
import jax
import jax.numpy as jnp
from jax.experimental import pallas as pl
from jax.experimental.pallas import tpu as pltpu


def attn_decoder_kernel(
    emb_ref,        # [T, H]   pre-gathered token embeddings
    hid0_ref,       # [1, H]   initial hidden state
    enc_ref,        # [L, H]   encoder outputs
    attn_wt_ref,    # [H, L]   attn Linear weight rows for the embedded half
    attn_wb_ref,    # [H, L]   attn Linear weight rows for the hidden half
    attn_b_ref,     # [1, L]
    comb_wt_ref,    # [H, H]   attn_combine weight rows for the embedded half
    comb_wb_ref,    # [H, H]   attn_combine weight rows for the attn_applied half
    comb_b_ref,     # [1, H]
    wih_ref,        # [H, 3H]  GRU input weights, gates (r,z,n) stacked on cols
    whh_ref,        # [H, 3H]  GRU hidden weights
    bih_ref,        # [1, 3H]
    bhh_ref,        # [1, 3H]
    outw_ref,       # [H, V]   output Linear weight (pre-transposed)
    outb_ref,       # [1, V]
    logp_ref,       # out [T, V]  per-step log-softmax
    attnw_ref,      # out [T, L]  per-step attention weights
    newh_ref,       # out [1, H]  final hidden
    attn_pre,       # scratch VMEM [T, L]  precomputed embedded half of attn
    comb_pre,       # scratch VMEM [T, H]  precomputed embedded half of attn_combine
    hs,             # scratch VMEM [T, H]  per-step GRU hidden states
):
    f32 = jnp.float32
    T, H = emb_ref.shape
    emb = emb_ref[...]                                       # [T, H]

    # ---- Phase 1: batched (M=T) token-dependent precompute, off the recurrence ----
    attn_pre[...] = (jnp.dot(emb, attn_wt_ref[...], preferred_element_type=f32)
                     + attn_b_ref[...])                      # [T, L]
    comb_pre[...] = (jnp.dot(emb, comb_wt_ref[...], preferred_element_type=f32)
                     + comb_b_ref[...])                      # [T, H]

    # Hoist loop-invariant weight loads out of the recurrence.
    attn_wb = attn_wb_ref[...]
    comb_wb = comb_wb_ref[...]
    enc = enc_ref[...]
    wih = wih_ref[...]
    whh = whh_ref[...]
    bih = bih_ref[...]
    bhh = bhh_ref[...]

    # ---- Phase 2: serial recurrence (only the hidden-state dependency chain) ----
    h = hid0_ref[...]                                        # [1, H]
    for t in range(T):                                       # static unroll (T small)
        row = pl.ds(t, 1)
        # attn_weights = softmax(attn(cat(embedded, hidden)))
        logits = attn_pre[row, :] + jnp.dot(h, attn_wb, preferred_element_type=f32)
        logits = logits - jnp.max(logits, axis=1, keepdims=True)
        e = jnp.exp(logits)
        aw = e / jnp.sum(e, axis=1, keepdims=True)           # exact softmax divide
        # attn_applied = attn_weights @ encoder_outputs
        applied = jnp.dot(aw, enc, preferred_element_type=f32)              # [1, H]
        # output = relu(attn_combine(cat(embedded, attn_applied)))
        x = comb_pre[row, :] + jnp.dot(applied, comb_wb, preferred_element_type=f32)
        x = jnp.maximum(x, 0.0)
        # dropout(p=0.1) -> identity (eval mode)
        # single-step, single-layer GRU (PyTorch semantics), fused gate matmuls
        gi = jnp.dot(x, wih, preferred_element_type=f32) + bih               # [1, 3H]
        gh = jnp.dot(h, whh, preferred_element_type=f32) + bhh               # [1, 3H]
        r = jax.nn.sigmoid(gi[:, 0:H] + gh[:, 0:H])
        z = jax.nn.sigmoid(gi[:, H:2 * H] + gh[:, H:2 * H])
        n = jnp.tanh(gi[:, 2 * H:3 * H] + r * gh[:, 2 * H:3 * H])
        h = (1.0 - z) * n + z * h                                            # [1, H]

        attnw_ref[row, :] = aw                               # resident block, row write
        hs[row, :] = h

    newh_ref[...] = h                                        # final hidden, written once

    # ---- Phase 3: batched (M=T) vocab projection + log-softmax ----
    out_logits = (jnp.dot(hs[...], outw_ref[...], preferred_element_type=f32)
                  + outb_ref[...])                           # [T, V]
    m = jnp.max(out_logits, axis=1, keepdims=True)
    shifted = out_logits - m
    lse = jnp.log(jnp.sum(jnp.exp(shifted), axis=1, keepdims=True))
    logp_ref[...] = shifted - lse


def attn_decoder_decode(tokens, hidden, encoder_outputs, params):
    """Run T decoding steps fused in one (grid-less) pallas_call.

    tokens: int32 [T]; hidden: [1,1,H]; encoder_outputs: [L,H].
    Returns (log-probs [T,V], final hidden [1,1,H], attention weights [T,L]).
    """
    T = int(tokens.shape[0])
    H = int(hidden.shape[-1])
    L = int(encoder_outputs.shape[0])
    V = int(params["out_b"].shape[-1])

    # Embedding gather for the T tokens happens once in the wrapper (cheap XLA
    # gather) -> no [V,*,H] table resident in VMEM, no in-loop gather.
    emb = params["embedding"][tokens.astype(jnp.int32)].astype(jnp.float32)  # [T, H]
    hid2 = hidden.reshape(1, H).astype(jnp.float32)
    enc = encoder_outputs.astype(jnp.float32)

    # Split the concat-style Linear weights into (embedded-half, hidden/applied-half).
    attn_wt, attn_wb = params["attn_w"][:H], params["attn_w"][H:]
    comb_wt, comb_wb = params["comb_w"][:H], params["comb_w"][H:]

    vmem = pl.BlockSpec(memory_space=pltpu.MemorySpace.VMEM)

    resident_elems = (T * H + H + L * H + 2 * H * L + L + 2 * H * H + H
                      + 2 * 3 * H * H + 2 * 3 * H + H * V + V          # inputs
                      + T * V + T * L + H                              # outputs
                      + T * L + 2 * T * H)                             # scratch
    vmem_limit = int(min(100 * 2 ** 20, max(8 * 2 ** 20, 8 * 4 * resident_elems)))

    cost = pl.CostEstimate(
        flops=(2 * T * H * L + 2 * T * H * H            # phase 1 precompute
               + T * (4 * H * L + 14 * H * H)           # per-step recurrence matmuls
               + 2 * T * H * V),                        # phase 3 vocab projection
        transcendentals=T * (L + 3 * H + V + 1),
        bytes_accessed=4 * resident_elems,
    )

    logp, attnw, newh = pl.pallas_call(
        attn_decoder_kernel,
        out_shape=(
            jax.ShapeDtypeStruct((T, V), jnp.float32),
            jax.ShapeDtypeStruct((T, L), jnp.float32),
            jax.ShapeDtypeStruct((1, H), jnp.float32),
        ),
        in_specs=[vmem] * 15,
        out_specs=(vmem, vmem, vmem),
        scratch_shapes=[
            pltpu.VMEM((T, L), jnp.float32),
            pltpu.VMEM((T, H), jnp.float32),
            pltpu.VMEM((T, H), jnp.float32),
        ],
        compiler_params=pltpu.CompilerParams(vmem_limit_bytes=vmem_limit),
        cost_estimate=cost,
    )(
        emb, hid2, enc,
        attn_wt, attn_wb, params["attn_b"],
        comb_wt, comb_wb, params["comb_b"],
        params["gru_wih"], params["gru_whh"], params["gru_bih"], params["gru_bhh"],
        params["out_w"], params["out_b"],
    )
    return logp, newh.reshape(1, 1, H), attnw


def attn_decoder_forward(token, hidden, encoder_outputs, params):
    """Single decoding step — matches AttnDecoderRNN.forward signature/outputs."""
    logp, newh, attnw = attn_decoder_decode(token.reshape(1), hidden,
                                            encoder_outputs, params)
    return logp, newh, attnw


def reference_decode(tokens, hidden, encoder_outputs, params):
    """Pure-JAX reference of T sequential forward() calls (module semantics)."""
    H = hidden.shape[-1]
    h = hidden.reshape(1, H)
    logps, attns = [], []
    for i in range(tokens.shape[0]):
        emb = params["embedding"][tokens[i]].reshape(1, H)
        eh = jnp.concatenate([emb, h], axis=1)
        aw = jax.nn.softmax(eh @ params["attn_w"] + params["attn_b"], axis=1)
        applied = aw @ encoder_outputs
        x = jnp.concatenate([emb, applied], axis=1) @ params["comb_w"] + params["comb_b"]
        x = jax.nn.relu(x)
        gi = x @ params["gru_wih"] + params["gru_bih"]
        gh = h @ params["gru_whh"] + params["gru_bhh"]
        r = jax.nn.sigmoid(gi[:, :H] + gh[:, :H])
        z = jax.nn.sigmoid(gi[:, H:2 * H] + gh[:, H:2 * H])
        n = jnp.tanh(gi[:, 2 * H:] + r * gh[:, 2 * H:])
        h = (1.0 - z) * n + z * h
        logps.append(jax.nn.log_softmax(h @ params["out_w"] + params["out_b"], axis=1))
        attns.append(aw)
    return jnp.concatenate(logps, 0), h.reshape(1, 1, H), jnp.concatenate(attns, 0)


def make_params(key, hidden_size, output_size, max_length):
    H, V, L = hidden_size, output_size, max_length
    ks = jax.random.split(key, 11)

    def u(k, shape, fan_in):
        s = 1.0 / jnp.sqrt(jnp.float32(fan_in))
        return jax.random.uniform(k, shape, jnp.float32, -s, s)

    return {
        "embedding": jax.random.normal(ks[0], (V, H), jnp.float32),
        # nn.Linear(2H, L) / nn.Linear(2H, H): weights pre-transposed to [in, out]
        "attn_w": u(ks[1], (2 * H, L), 2 * H),
        "attn_b": u(ks[2], (1, L), 2 * H),
        "comb_w": u(ks[3], (2 * H, H), 2 * H),
        "comb_b": u(ks[4], (1, H), 2 * H),
        # GRU weights stacked along the output axis in gate order (r, z, n)
        "gru_wih": u(ks[5], (H, 3 * H), H),
        "gru_whh": u(ks[6], (H, 3 * H), H),
        "gru_bih": u(ks[7], (1, 3 * H), H),
        "gru_bhh": u(ks[8], (1, 3 * H), H),
        "out_w": u(ks[9], (H, V), H),
        "out_b": u(ks[10], (1, V), H),
    }


if __name__ == "__main__":
    HIDDEN, VOCAB, MAX_LENGTH, T = 32, 48, 50, 6

    key = jax.random.PRNGKey(0)
    pkey, ekey = jax.random.split(key)
    params = make_params(pkey, HIDDEN, VOCAB, MAX_LENGTH)

    tokens = jnp.array([3, 7, 1, 0, 11, 5], dtype=jnp.int32)
    hidden0 = jnp.zeros((1, 1, HIDDEN), jnp.float32)              # initHidden()
    encoder_outputs = jax.random.normal(ekey, (MAX_LENGTH, HIDDEN), jnp.float32)

    # single-step forward (matches the PyTorch module's forward signature)
    logp1, hid1, attn1 = attn_decoder_forward(tokens[:1], hidden0,
                                              encoder_outputs, params)
    jax.block_until_ready((logp1, hid1, attn1))
    assert logp1.shape == (1, VOCAB)
    assert hid1.shape == (1, 1, HIDDEN)
    assert attn1.shape == (1, MAX_LENGTH)

    # fused multi-step decode (whole time loop inside one pallas_call)
    logp, hidT, attnw = attn_decoder_decode(tokens, hidden0, encoder_outputs, params)
    jax.block_until_ready((logp, hidT, attnw))
    assert logp.shape == (T, VOCAB)
    assert hidT.shape == (1, 1, HIDDEN)
    assert attnw.shape == (T, MAX_LENGTH)

    # sanity: exact softmax -> rows normalize tightly
    assert float(jnp.max(jnp.abs(jnp.sum(attnw, axis=1) - 1.0))) < 1e-5
    assert float(jnp.max(jnp.abs(jnp.sum(jnp.exp(logp), axis=1) - 1.0))) < 1e-5

    # correctness vs pure-JAX reference (tight tolerances now)
    rlogp, rhid, rattn = reference_decode(tokens, hidden0, encoder_outputs, params)
    assert jnp.allclose(logp, rlogp, atol=1e-4, rtol=1e-4)
    assert jnp.allclose(attnw, rattn, atol=1e-4, rtol=1e-4)
    assert jnp.allclose(hidT, rhid, atol=1e-4, rtol=1e-4)

    print("KERNEL_OK")
</pallas_src>

<mosaic_0001>
module attributes {stable_mosaic.version = 11 : i64} {
  func.func @attn_decoder_kernel(%arg0: memref<1x32xf32, #tpu.memory_space<vmem>>, %arg1: memref<1x32xf32, #tpu.memory_space<vmem>>, %arg2: memref<50x32xf32, #tpu.memory_space<vmem>>, %arg3: memref<32x50xf32, #tpu.memory_space<vmem>>, %arg4: memref<32x50xf32, #tpu.memory_space<vmem>>, %arg5: memref<1x50xf32, #tpu.memory_space<vmem>>, %arg6: memref<32x32xf32, #tpu.memory_space<vmem>>, %arg7: memref<32x32xf32, #tpu.memory_space<vmem>>, %arg8: memref<1x32xf32, #tpu.memory_space<vmem>>, %arg9: memref<32x96xf32, #tpu.memory_space<vmem>>, %arg10: memref<32x96xf32, #tpu.memory_space<vmem>>, %arg11: memref<1x96xf32, #tpu.memory_space<vmem>>, %arg12: memref<1x96xf32, #tpu.memory_space<vmem>>, %arg13: memref<32x48xf32, #tpu.memory_space<vmem>>, %arg14: memref<1x48xf32, #tpu.memory_space<vmem>>, %arg15: memref<1x48xf32, #tpu.memory_space<vmem>>, %arg16: memref<1x50xf32, #tpu.memory_space<vmem>>, %arg17: memref<1x32xf32, #tpu.memory_space<vmem>>, %arg18: memref<1x50xf32, #tpu.memory_space<vmem>>, %arg19: memref<1x32xf32, #tpu.memory_space<vmem>>, %arg20: memref<1x32xf32, #tpu.memory_space<vmem>>) attributes {dimension_semantics = [], scalar_prefetch = 0 : i64, scratch_operands = 3 : i64, tpu.core_type = #tpu.core_type<tc>} {
    %c0 = arith.constant 0 : index
    %c0_0 = arith.constant 0 : index
    %0 = vector.load %arg0[%c0, %c0_0] : memref<1x32xf32, #tpu.memory_space<vmem>>, vector<1x32xf32>
    %c0_1 = arith.constant 0 : index
    %c0_2 = arith.constant 0 : index
    %1 = vector.load %arg3[%c0_1, %c0_2] : memref<32x50xf32, #tpu.memory_space<vmem>>, vector<32x50xf32>
    %cst = arith.constant dense<0.000000e+00> : vector<1x50xf32>
    %2 = tpu.matmul %0, %1, %cst {dimension_numbers = #tpu.dot_dimension_numbers<[1], [0], [0], [1], [0, 0, 1, 1], [], []>} : vector<1x32xf32>, vector<32x50xf32>, vector<1x50xf32> -> vector<1x50xf32>
    %c0_3 = arith.constant 0 : index
    %c0_4 = arith.constant 0 : index
    %3 = vector.load %arg5[%c0_3, %c0_4] : memref<1x50xf32, #tpu.memory_space<vmem>>, vector<1x50xf32>
    %4 = arith.addf %2, %3 : vector<1x50xf32>
    %c0_5 = arith.constant 0 : index
    %c0_6 = arith.constant 0 : index
    %5 = vector.load %arg18[%c0_5, %c0_6] : memref<1x50xf32, #tpu.memory_space<vmem>>, vector<1x50xf32>
    tpu.vector_store %arg18[%c0_5, %c0_6], %4 {strides = array<i32>} : memref<1x50xf32, #tpu.memory_space<vmem>>, vector<1x50xf32>,
    %c0_7 = arith.constant 0 : index
    %c0_8 = arith.constant 0 : index
    %6 = vector.load %arg6[%c0_7, %c0_8] : memref<32x32xf32, #tpu.memory_space<vmem>>, vector<32x32xf32>
    %cst_9 = arith.constant dense<0.000000e+00> : vector<1x32xf32>
    %7 = tpu.matmul %0, %6, %cst_9 {dimension_numbers = #tpu.dot_dimension_numbers<[1], [0], [0], [1], [0, 0, 1, 1], [], []>} : vector<1x32xf32>, vector<32x32xf32>, vector<1x32xf32> -> vector<1x32xf32>
    %c0_10 = arith.constant 0 : index
    %c0_11 = arith.constant 0 : index
    %8 = vector.load %arg8[%c0_10, %c0_11] : memref<1x32xf32, #tpu.memory_space<vmem>>, vector<1x32xf32>
    %9 = arith.addf %7, %8 : vector<1x32xf32>
    %c0_12 = arith.constant 0 : index
    %c0_13 = arith.constant 0 : index
    %10 = vector.load %arg19[%c0_12, %c0_13] : memref<1x32xf32, #tpu.memory_space<vmem>>, vector<1x32xf32>
    tpu.vector_store %arg19[%c0_12, %c0_13], %9 {strides = array<i32>} : memref<1x32xf32, #tpu.memory_space<vmem>>, vector<1x32xf32>,
    %c0_14 = arith.constant 0 : index
    %c0_15 = arith.constant 0 : index
    %11 = vector.load %arg4[%c0_14, %c0_15] : memref<32x50xf32, #tpu.memory_space<vmem>>, vector<32x50xf32>
    %c0_16 = arith.constant 0 : index
    %c0_17 = arith.constant 0 : index
    %12 = vector.load %arg7[%c0_16, %c0_17] : memref<32x32xf32, #tpu.memory_space<vmem>>, vector<32x32xf32>
    %c0_18 = arith.constant 0 : index
    %c0_19 = arith.constant 0 : index
    %13 = vector.load %arg2[%c0_18, %c0_19] : memref<50x32xf32, #tpu.memory_space<vmem>>, vector<50x32xf32>
    %c0_20 = arith.constant 0 : index
    %c0_21 = arith.constant 0 : index
    %14 = vector.load %arg9[%c0_20, %c0_21] : memref<32x96xf32, #tpu.memory_space<vmem>>, vector<32x96xf32>
    %c0_22 = arith.constant 0 : index
    %c0_23 = arith.constant 0 : index
    %15 = vector.load %arg10[%c0_22, %c0_23] : memref<32x96xf32, #tpu.memory_space<vmem>>, vector<32x96xf32>
    %c0_24 = arith.constant 0 : index
    %c0_25 = arith.constant 0 : index
    %16 = vector.load %arg11[%c0_24, %c0_25] : memref<1x96xf32, #tpu.memory_space<vmem>>, vector<1x96xf32>
    %c0_26 = arith.constant 0 : index
    %c0_27 = arith.constant 0 : index
    %17 = vector.load %arg12[%c0_26, %c0_27] : memref<1x96xf32, #tpu.memory_space<vmem>>, vector<1x96xf32>
    %c0_28 = arith.constant 0 : index
    %c0_29 = arith.constant 0 : index
    %18 = vector.load %arg1[%c0_28, %c0_29] : memref<1x32xf32, #tpu.memory_space<vmem>>, vector<1x32xf32>
    %c0_30 = arith.constant 0 : index
    %c0_31 = arith.constant 0 : index
    %19 = vector.load %arg18[%c0_30, %c0_31] : memref<1x50xf32, #tpu.memory_space<vmem>>, vector<1x50xf32>
    %cst_32 = arith.constant dense<0.000000e+00> : vector<1x50xf32>
    %20 = tpu.matmul %18, %11, %cst_32 {dimension_numbers = #tpu.dot_dimension_numbers<[1], [0], [0], [1], [0, 0, 1, 1], [], []>} : vector<1x32xf32>, vector<32x50xf32>, vector<1x50xf32> -> vector<1x50xf32>
    %21 = arith.addf %19, %20 : vector<1x50xf32>
    %cst_33 = arith.constant dense<0xFF800000> : vector<1xf32>
    %22 = vector.multi_reduction <maximumf>, %21, %cst_33 [1] : vector<1x50xf32> to vector<1xf32>
    %23 = vector.shape_cast %22 : vector<1xf32> to vector<1x1xf32>
    %24 = vector.broadcast %23 : vector<1x1xf32> to vector<1x50xf32>
    %25 = arith.subf %21, %24 : vector<1x50xf32>
    %26 = math.exp %25 : vector<1x50xf32>
    %cst_34 = arith.constant dense<0.000000e+00> : vector<1xf32>
    %27 = vector.multi_reduction <add>, %26, %cst_34 [1] : vector<1x50xf32> to vector<1xf32>
    %28 = vector.shape_cast %27 : vector<1xf32> to vector<1x1xf32>
    %29 = vector.broadcast %28 : vector<1x1xf32> to vector<1x50xf32>
    %30 = arith.divf %26, %29 : vector<1x50xf32>
    %cst_35 = arith.constant dense<0.000000e+00> : vector<1x32xf32>
    %31 = tpu.matmul %30, %13, %cst_35 {dimension_numbers = #tpu.dot_dimension_numbers<[1], [0], [0], [1], [0, 0, 1, 1], [], []>} : vector<1x50xf32>, vector<50x32xf32>, vector<1x32xf32> -> vector<1x32xf32>
    %c0_36 = arith.constant 0 : index
    %c0_37 = arith.constant 0 : index
    %32 = vector.load %arg19[%c0_36, %c0_37] : memref<1x32xf32, #tpu.memory_space<vmem>>, vector<1x32xf32>
    %cst_38 = arith.constant dense<0.000000e+00> : vector<1x32xf32>
    %33 = tpu.matmul %31, %12, %cst_38 {dimension_numbers = #tpu.dot_dimension_numbers<[1], [0], [0], [1], [0, 0, 1, 1], [], []>} : vector<1x32xf32>, vector<32x32xf32>, vector<1x32xf32> -> vector<1x32xf32>
    %34 = arith.addf %32, %33 : vector<1x32xf32>
    %cst_39 = arith.constant 0.000000e+00 : f32
    %35 = vector.broadcast %cst_39 : f32 to vector<1x32xf32>
    %36 = arith.maximumf %34, %35 : vector<1x32xf32>
    %cst_40 = arith.constant dense<0.000000e+00> : vector<1x96xf32>
    %37 = tpu.matmul %36, %14, %cst_40 {dimension_numbers = #tpu.dot_dimension_numbers<[1], [0], [0], [1], [0, 0, 1, 1], [], []>} : vector<1x32xf32>, vector<32x96xf32>, vector<1x96xf32> -> vector<1x96xf32>
    %38 = arith.addf %37, %16 : vector<1x96xf32>
    %cst_41 = arith.constant dense<0.000000e+00> : vector<1x96xf32>
    %39 = tpu.matmul %18, %15, %cst_41 {dimension_numbers = #tpu.dot_dimension_numbers<[1], [0], [0], [1], [0, 0, 1, 1], [], []>} : vector<1x32xf32>, vector<32x96xf32>, vector<1x96xf32> -> vector<1x96xf32>
    %40 = arith.addf %39, %17 : vector<1x96xf32>
    %41 = vector.extract_strided_slice %38 {offsets = [0, 0], sizes = [1, 32], strides = [1, 1]} : vector<1x96xf32> to vector<1x32xf32>
    %42 = vector.extract_strided_slice %40 {offsets = [0, 0], sizes = [1, 32], strides = [1, 1]} : vector<1x96xf32> to vector<1x32xf32>
    %43 = arith.addf %41, %42 : vector<1x32xf32>
    %44 = arith.negf %43 : vector<1x32xf32>
    %45 = math.exp %44 : vector<1x32xf32>
    %cst_42 = arith.constant 1.000000e+00 : f32
    %46 = vector.broadcast %cst_42 : f32 to vector<1x32xf32>
    %47 = arith.addf %46, %45 : vector<1x32xf32>
    %48 = arith.divf %46, %47 : vector<1x32xf32>
    %49 = vector.extract_strided_slice %38 {offsets = [0, 32], sizes = [1, 32], strides = [1, 1]} : vector<1x96xf32> to vector<1x32xf32>
    %50 = vector.extract_strided_slice %40 {offsets = [0, 32], sizes = [1, 32], strides = [1, 1]} : vector<1x96xf32> to vector<1x32xf32>
    %51 = arith.addf %49, %50 : vector<1x32xf32>
    %52 = arith.negf %51 : vector<1x32xf32>
    %53 = math.exp %52 : vector<1x32xf32>
    %cst_43 = arith.constant 1.000000e+00 : f32
    %54 = vector.broadcast %cst_43 : f32 to vector<1x32xf32>
    %55 = arith.addf %54, %53 : vector<1x32xf32>
    %56 = arith.divf %54, %55 : vector<1x32xf32>
    %57 = vector.extract_strided_slice %38 {offsets = [0, 64], sizes = [1, 32], strides = [1, 1]} : vector<1x96xf32> to vector<1x32xf32>
    %58 = vector.extract_strided_slice %40 {offsets = [0, 64], sizes = [1, 32], strides = [1, 1]} : vector<1x96xf32> to vector<1x32xf32>
    %59 = arith.mulf %48, %58 : vector<1x32xf32>
    %60 = arith.addf %57, %59 : vector<1x32xf32>
    %61 = math.tanh %60 : vector<1x32xf32>
    %cst_44 = arith.constant 1.000000e+00 : f32
    %62 = vector.broadcast %cst_44 : f32 to vector<1x32xf32>
    %63 = arith.subf %62, %56 : vector<1x32xf32>
    %64 = arith.mulf %63, %61 : vector<1x32xf32>
    %65 = arith.mulf %56, %18 : vector<1x32xf32>
    %66 = arith.addf %64, %65 : vector<1x32xf32>
    %c0_45 = arith.constant 0 : index
    %c0_46 = arith.constant 0 : index
    %67 = vector.load %arg16[%c0_45, %c0_46] : memref<1x50xf32, #tpu.memory_space<vmem>>, vector<1x50xf32>
    tpu.vector_store %arg16[%c0_45, %c0_46], %30 {strides = array<i32>} : memref<1x50xf32, #tpu.memory_space<vmem>>, vector<1x50xf32>,
    %c0_47 = arith.constant 0 : index
    %c0_48 = arith.constant 0 : index
    %68 = vector.load %arg20[%c0_47, %c0_48] : memref<1x32xf32, #tpu.memory_space<vmem>>, vector<1x32xf32>
    tpu.vector_store %arg20[%c0_47, %c0_48], %66 {strides = array<i32>} : memref<1x32xf32, #tpu.memory_space<vmem>>, vector<1x32xf32>,
    %c0_49 = arith.constant 0 : index
    %c0_50 = arith.constant 0 : index
    %69 = vector.load %arg17[%c0_49, %c0_50] : memref<1x32xf32, #tpu.memory_space<vmem>>, vector<1x32xf32>
    tpu.vector_store %arg17[%c0_49, %c0_50], %66 {strides = array<i32>} : memref<1x32xf32, #tpu.memory_space<vmem>>, vector<1x32xf32>,
    %c0_51 = arith.constant 0 : index
    %c0_52 = arith.constant 0 : index
    %70 = vector.load %arg20[%c0_51, %c0_52] : memref<1x32xf32, #tpu.memory_space<vmem>>, vector<1x32xf32>
    %c0_53 = arith.constant 0 : index
    %c0_54 = arith.constant 0 : index
    %71 = vector.load %arg13[%c0_53, %c0_54] : memref<32x48xf32, #tpu.memory_space<vmem>>, vector<32x48xf32>
    %cst_55 = arith.constant dense<0.000000e+00> : vector<1x48xf32>
    %72 = tpu.matmul %70, %71, %cst_55 {dimension_numbers = #tpu.dot_dimension_numbers<[1], [0], [0], [1], [0, 0, 1, 1], [], []>} : vector<1x32xf32>, vector<32x48xf32>, vector<1x48xf32> -> vector<1x48xf32>
    %c0_56 = arith.constant 0 : index
    %c0_57 = arith.constant 0 : index
    %73 = vector.load %arg14[%c0_56, %c0_57] : memref<1x48xf32, #tpu.memory_space<vmem>>, vector<1x48xf32>
    %74 = arith.addf %72, %73 : vector<1x48xf32>
    %cst_58 = arith.constant dense<0xFF800000> : vector<1xf32>
    %75 = vector.multi_reduction <maximumf>, %74, %cst_58 [1] : vector<1x48xf32> to vector<1xf32>
    %76 = vector.shape_cast %75 : vector<1xf32> to vector<1x1xf32>
    %77 = vector.broadcast %76 : vector<1x1xf32> to vector<1x48xf32>
    %78 = arith.subf %74, %77 : vector<1x48xf32>
    %79 = math.exp %78 : vector<1x48xf32>
    %cst_59 = arith.constant dense<0.000000e+00> : vector<1xf32>
    %80 = vector.multi_reduction <add>, %79, %cst_59 [1] : vector<1x48xf32> to vector<1xf32>
    %81 = vector.shape_cast %80 : vector<1xf32> to vector<1x1xf32>
    %82 = math.log %81 : vector<1x1xf32>
    %83 = vector.broadcast %82 : vector<1x1xf32> to vector<1x48xf32>
    %84 = arith.subf %78, %83 : vector<1x48xf32>
    %c0_60 = arith.constant 0 : index
    %c0_61 = arith.constant 0 : index
    %85 = vector.load %arg15[%c0_60, %c0_61] : memref<1x48xf32, #tpu.memory_space<vmem>>, vector<1x48xf32>
    tpu.vector_store %arg15[%c0_60, %c0_61], %84 {strides = array<i32>} : memref<1x48xf32, #tpu.memory_space<vmem>>, vector<1x48xf32>,
    return
  }
}

</mosaic_0001>

<llo_original>
// kernel: tpu_custom_call.1
$region0: #{tpu_custom_call.1}
  #allocation0 [shape = 'u32[]', space=smem, size = 0x4, offset = 0x4, fixed_abs, tag = 'smem constant byte address 0x4 - core index']
  #allocation1 [shape = 'u32[144,128]{1,0:T(1,128)}', space=vmem, size = 0x12000, scoped, tag = 'internal scratch']
  #allocation2 [shape = 'f32[1,50]{1,0:T(1,128)}', space=vmem, size = 0x200, scoped, tag = 'scratch operand']
  #allocation3 [shape = 'f32[1,32]{1,0:T(1,128)}', space=vmem, size = 0x200, scoped, tag = 'scratch operand']
  #allocation4 [shape = 'f32[1,32]{1,0:T(1,128)}', space=vmem, size = 0x200, scoped, tag = 'scratch operand']
  %s0 = inlined_call_operand.vmem [shape: f32[1,32], index: 0, kind: input, shape index: {}]
  %s1 = inlined_call_operand.hbm [shape: f32[1,32], index: 1, kind: input, shape index: {}]
  %s2 = inlined_call_operand.vmem [shape: f32[50,32], index: 2, kind: input, shape index: {}]
  %s3 = inlined_call_operand.vmem [shape: f32[32,50], index: 3, kind: input, shape index: {}]
  %s4 = inlined_call_operand.vmem [shape: f32[32,50], index: 4, kind: input, shape index: {}]
  %s5 = inlined_call_operand.hbm [shape: f32[1,50], index: 5, kind: input, shape index: {}]
  %s6 = inlined_call_operand.vmem [shape: f32[32,32], index: 6, kind: input, shape index: {}]
  %s7 = inlined_call_operand.hbm [shape: f32[32,32], index: 7, kind: input, shape index: {}]
  %s8 = inlined_call_operand.vmem [shape: f32[1,32], index: 8, kind: input, shape index: {}]
  %s9 = inlined_call_operand.hbm [shape: f32[32,96], index: 9, kind: input, shape index: {}]
  %s10 = inlined_call_operand.hbm [shape: f32[32,96], index: 10, kind: input, shape index: {}]
  %s11 = inlined_call_operand.vmem [shape: f32[1,96], index: 11, kind: input, shape index: {}]
  %s12 = inlined_call_operand.vmem [shape: f32[1,96], index: 12, kind: input, shape index: {}]
  %s13 = inlined_call_operand.hbm [shape: f32[32,48], index: 13, kind: input, shape index: {}]
  %s14 = inlined_call_operand.vmem [shape: f32[1,48], index: 14, kind: input, shape index: {}]
  %s15 = inlined_call_operand.hbm [shape: f32[1,48], index: 15, kind: output, shape index: {0}]
  %s16 = inlined_call_operand.hbm [shape: f32[1,50], index: 16, kind: output, shape index: {1}]
  %s17 = inlined_call_operand.hbm [shape: f32[1,32], index: 17, kind: output, shape index: {2}]
  %18 = xla_tuple %s15, %s16, %s17
  %s19 = sld [smem:[#allocation0]]
  $region110: #{tpu_custom_call.1} parent=0
    _
  %s21 = ssub.s32 1, %s19
  %s22 = scalar_select 0, %s21, %s19
  $region1: #{tpu_custom_call.1} parent=0
    #allocation5 [shape = 'u8[512]{0}', space=vmem, size = 0x400, scoped, tag = 'input window, operand 1, single buffered']
    #allocation6 [shape = 's32[1]{0}', space=sflag, size = 0x4, scoped, tag = 'scoped memory for tpu_custom_call.1']
    #allocation7 [shape = 's32[1]{0}', space=sflag, size = 0x4, scoped, tag = 'scoped memory for tpu_custom_call.1']
    #allocation8 [shape = 'u8[512]{0}', space=vmem, size = 0x400, scoped, tag = 'input window, operand 5, single buffered']
    #allocation9 [shape = 's32[1]{0}', space=sflag, size = 0x4, scoped, tag = 'scoped memory for tpu_custom_call.1']
    #allocation10 [shape = 'u8[16384]{0}', space=vmem, size = 0x4000, scoped, tag = 'input window, operand 7, single buffered']
    #allocation11 [shape = 'u8[16384]{0}', space=vmem, size = 0x4000, scoped, tag = 'input window, operand 9, single buffered']
    #allocation12 [shape = 's32[1]{0}', space=sflag, size = 0x4, scoped, tag = 'scoped memory for tpu_custom_call.1']
    #allocation13 [shape = 'u8[16384]{0}', space=vmem, size = 0x4000, scoped, tag = 'input window, operand 10, single buffered']
    #allocation14 [shape = 'u8[16384]{0}', space=vmem, size = 0x4000, scoped, tag = 'input window, operand 13, single buffered']
    #allocation15 [shape = 's32[1]{0}', space=sflag, size = 0x4, scoped, tag = 'scoped memory for tpu_custom_call.1']
    #allocation16 [shape = 'u8[512]{0}', space=vmem, size = 0x400, scoped, tag = 'output window, operand 0, single buffered']
    #allocation17 [shape = 'u8[512]{0}', space=vmem, size = 0x400, scoped, tag = 'output window, operand 1, single buffered']
    #allocation18 [shape = 's32[1]{0}', space=sflag, size = 0x4, scoped, tag = 'scoped memory for tpu_custom_call.1']
    #allocation19 [shape = 'u8[512]{0}', space=vmem, size = 0x400, scoped, tag = 'output window, operand 2, single buffered']
    %23 = vsyncpa [#allocation6], 0
    %24 = vsyncpa [#allocation9], 0
    %25 = vsyncpa [#allocation12], 0
    %26 = vsyncpa [#allocation15], 0
    %27 = vsyncpa [#allocation7], 0
    %28 = vsyncpa [#allocation18], 0
    // Predicated region
    $region2: #{tpu_custom_call.1} parent=1 // pred_check
      _
    $region3: #{tpu_custom_call.1} parent=1 // pred_check_branch
      %30 = sbr.rel (0) target = $region5
    $region4: #{tpu_custom_call.1} parent=1 // pred_region
      _
    $region5: #{tpu_custom_call.1} parent=1 // pred_fallthru
      _
    // Predicated region
    $region6: #{tpu_custom_call.1} parent=1 // pred_check
      _
    $region7: #{tpu_custom_call.1} parent=1 // pred_check_branch
      %32 = sbr.rel (0) target = $region9
    $region8: #{tpu_custom_call.1} parent=1 // pred_region
      %s34 = ssub.s32 16, 16
      %35 = vsyncadd [#allocation6], %s34
      %s37 = sshll.u32 [#allocation5], 4
      %s38 = int_to_ptr.vmem [resolvable:$true] %s37
      %40 = dma.hbm_to_vmem [thread:$0]  %s1, 16, %s38, [#allocation6]
    $region9: #{tpu_custom_call.1} parent=1 // pred_fallthru
      _
    // Predicated region
    $region10: #{tpu_custom_call.1} parent=1 // pred_check
      _
    $region11: #{tpu_custom_call.1} parent=1 // pred_check_branch
      %42 = sbr.rel (0) target = $region13
    $region12: #{tpu_custom_call.1} parent=1 // pred_region
      _
    $region13: #{tpu_custom_call.1} parent=1 // pred_fallthru
      _
    // Predicated region
    $region14: #{tpu_custom_call.1} parent=1 // pred_check
      _
    $region15: #{tpu_custom_call.1} parent=1 // pred_check_branch
      %44 = sbr.rel (0) target = $region17
    $region16: #{tpu_custom_call.1} parent=1 // pred_region
      _
    $region17: #{tpu_custom_call.1} parent=1 // pred_fallthru
      _
    // Predicated region
    $region18: #{tpu_custom_call.1} parent=1 // pred_check
      _
    $region19: #{tpu_custom_call.1} parent=1 // pred_check_branch
      %46 = sbr.rel (0) target = $region21
    $region20: #{tpu_custom_call.1} parent=1 // pred_region
      _
    $region21: #{tpu_custom_call.1} parent=1 // pred_fallthru
      _
    // Predicated region
    $region22: #{tpu_custom_call.1} parent=1 // pred_check
      _
    $region23: #{tpu_custom_call.1} parent=1 // pred_check_branch
      %48 = sbr.rel (0) target = $region25
    $region24: #{tpu_custom_call.1} parent=1 // pred_region
      %s50 = ssub.s32 16, 16
      %51 = vsyncadd [#allocation9], %s50
      %s53 = sshll.u32 [#allocation8], 4
      %s54 = int_to_ptr.vmem [resolvable:$true] %s53
      %56 = dma.hbm_to_vmem [thread:$0]  %s5, 16, %s54, [#allocation9]
    $region25: #{tpu_custom_call.1} parent=1 // pred_fallthru
      _
    // Predicated region
    $region26: #{tpu_custom_call.1} parent=1 // pred_check
      _
    $region27: #{tpu_custom_call.1} parent=1 // pred_check_branch
      %58 = sbr.rel (0) target = $region29
    $region28: #{tpu_custom_call.1} parent=1 // pred_region
      _
    $region29: #{tpu_custom_call.1} parent=1 // pred_fallthru
      _
    // Predicated region
    $region30: #{tpu_custom_call.1} parent=1 // pred_check
      _
    $region31: #{tpu_custom_call.1} parent=1 // pred_check_branch
      %60 = sbr.rel (0) target = $region33
    $region32: #{tpu_custom_call.1} parent=1 // pred_region
      %s62 = ssub.s32 512, 512
      %63 = vsyncadd [#allocation9], %s62
      %s64 = sshll.u32 [#allocation10], 4
      %s65 = int_to_ptr.vmem [resolvable:$true] %s64
      %70 = dma.hbm_to_vmem [thread:$0]  %s7, 512, %s65, [#allocation9], 128, 128, 8
    $region33: #{tpu_custom_call.1} parent=1 // pred_fallthru
      _
    // Predicated region
    $region34: #{tpu_custom_call.1} parent=1 // pred_check
      _
    $region35: #{tpu_custom_call.1} parent=1 // pred_check_branch
      %72 = sbr.rel (0) target = $region37
    $region36: #{tpu_custom_call.1} parent=1 // pred_region
      _
    $region37: #{tpu_custom_call.1} parent=1 // pred_fallthru
      _
    // Predicated region
    $region38: #{tpu_custom_call.1} parent=1 // pred_check
      _
    $region39: #{tpu_custom_call.1} parent=1 // pred_check_branch
      %74 = sbr.rel (0) target = $region41
    $region40: #{tpu_custom_call.1} parent=1 // pred_region
      %s76 = ssub.s32 512, 512
      %77 = vsyncadd [#allocation12], %s76
      %s78 = sshll.u32 [#allocation11], 4
      %s79 = int_to_ptr.vmem [resolvable:$true] %s78
      %84 = dma.hbm_to_vmem [thread:$0]  %s9, 512, %s79, [#allocation12], 128, 128, 8
    $region41: #{tpu_custom_call.1} parent=1 // pred_fallthru
      _
    // Predicated region
    $region42: #{tpu_custom_call.1} parent=1 // pred_check
      _
    $region43: #{tpu_custom_call.1} parent=1 // pred_check_branch
      %86 = sbr.rel (0) target = $region45
    $region44: #{tpu_custom_call.1} parent=1 // pred_region
      %s88 = ssub.s32 512, 512
      %89 = vsyncadd [#allocation12], %s88
      %s90 = sshll.u32 [#allocation13], 4
      %s91 = int_to_ptr.vmem [resolvable:$true] %s90
      %96 = dma.hbm_to_vmem [thread:$0]  %s10, 512, %s91, [#allocation12], 128, 128, 8
    $region45: #{tpu_custom_call.1} parent=1 // pred_fallthru
      _
    // Predicated region
    $region46: #{tpu_custom_call.1} parent=1 // pred_check
      _
    $region47: #{tpu_custom_call.1} parent=1 // pred_check_branch
      %98 = sbr.rel (0) target = $region49
    $region48: #{tpu_custom_call.1} parent=1 // pred_region
      _
    $region49: #{tpu_custom_call.1} parent=1 // pred_fallthru
      _
    // Predicated region
    $region50: #{tpu_custom_call.1} parent=1 // pred_check
      _
    $region51: #{tpu_custom_call.1} parent=1 // pred_check_branch
      %100 = sbr.rel (0) target = $region53
    $region52: #{tpu_custom_call.1} parent=1 // pred_region
      _
    $region53: #{tpu_custom_call.1} parent=1 // pred_fallthru
      _
    // Predicated region
    $region54: #{tpu_custom_call.1} parent=1 // pred_check
      _
    $region55: #{tpu_custom_call.1} parent=1 // pred_check_branch
      %102 = sbr.rel (0) target = $region57
    $region56: #{tpu_custom_call.1} parent=1 // pred_region
      %s104 = ssub.s32 512, 512
      %105 = vsyncadd [#allocation15], %s104
      %s106 = sshll.u32 [#allocation14], 4
      %s107 = int_to_ptr.vmem [resolvable:$true] %s106
      %112 = dma.hbm_to_vmem [thread:$0]  %s13, 512, %s107, [#allocation15], 128, 128, 8
    $region57: #{tpu_custom_call.1} parent=1 // pred_fallthru
      _
    // Predicated region
    $region58: #{tpu_custom_call.1} parent=1 // pred_check
      _
    $region59: #{tpu_custom_call.1} parent=1 // pred_check_branch
      %114 = sbr.rel (0) target = $region61
    $region60: #{tpu_custom_call.1} parent=1 // pred_region
      _
    $region61: #{tpu_custom_call.1} parent=1 // pred_fallthru
      _
    // Predicated region
    $region62: #{tpu_custom_call.1} parent=1 // pred_check
      _
    $region63: #{tpu_custom_call.1} parent=1 // pred_check_branch
      %116 = sbr.rel (0) target = $region65
    $region64: #{tpu_custom_call.1} parent=1 // pred_region
      %117 = dma.done [#allocation6], 16
    $region65: #{tpu_custom_call.1} parent=1 // pred_fallthru
      _
    // Predicated region
    $region66: #{tpu_custom_call.1} parent=1 // pred_check
      _
    $region67: #{tpu_custom_call.1} parent=1 // pred_check_branch
      %119 = sbr.rel (0) target = $region69
    $region68: #{tpu_custom_call.1} parent=1 // pred_region
      %120 = dma.done [#allocation9], 16
    $region69: #{tpu_custom_call.1} parent=1 // pred_fallthru
      _
    // Predicated region
    $region70: #{tpu_custom_call.1} parent=1 // pred_check
      _
    $region71: #{tpu_custom_call.1} parent=1 // pred_check_branch
      %122 = sbr.rel (0) target = $region73
    $region72: #{tpu_custom_call.1} parent=1 // pred_region
      %123 = dma.done [#allocation9], 512
    $region73: #{tpu_custom_call.1} parent=1 // pred_fallthru
      _
    // Predicated region
    $region74: #{tpu_custom_call.1} parent=1 // pred_check
      _
    $region75: #{tpu_custom_call.1} parent=1 // pred_check_branch
      %125 = sbr.rel (0) target = $region77
    $region76: #{tpu_custom_call.1} parent=1 // pred_region
      %126 = dma.done [#allocation12], 512
    $region77: #{tpu_custom_call.1} parent=1 // pred_fallthru
      _
    // Predicated region
    $region78: #{tpu_custom_call.1} parent=1 // pred_check
      _
    $region79: #{tpu_custom_call.1} parent=1 // pred_check_branch
      %128 = sbr.rel (0) target = $region81
    $region80: #{tpu_custom_call.1} parent=1 // pred_region
      %129 = dma.done [#allocation12], 512
    $region81: #{tpu_custom_call.1} parent=1 // pred_fallthru
      _
    // Predicated region
    $region82: #{tpu_custom_call.1} parent=1 // pred_check
      _
    $region83: #{tpu_custom_call.1} parent=1 // pred_check_branch
      %131 = sbr.rel (0) target = $region85
    $region84: #{tpu_custom_call.1} parent=1 // pred_region
      %132 = dma.done [#allocation15], 512
    $region85: #{tpu_custom_call.1} parent=1 // pred_fallthru
      _
    %v133 = vld [vmem:[%s0] sm:$0x1]
    %v134 = vld [vmem:[%s3] sm:$0xff]
    %v135 = vld [vmem:[%s3 + $0x8] sm:$0xff]
    %v136 = vld [vmem:[%s3 + $0x10] sm:$0xff]
    %v137 = vld [vmem:[%s3 + $0x18] sm:$0xff]
    %v138 = vld [vmem:[#allocation8] sm:$0x1]
    %vm139 = vcmask 261120
    %v141 = vsel %vm139, %v133, 0
    %143 = vmatprep.subr.mxu0 0.0
    %144 = vmatpush1.msra.mxu0 0.0
    %145 = vmatprep.subr.mxu0 0.0
    %146 = vmatpush1.msra.mxu0 0.0
    %147 = vmatprep.subr.mxu0 0.0
    %148 = vmatpush1.msra.mxu0 0.0
    %149 = vmatprep.subr.mxu0 0.0
    %150 = vmatpush1.msra.mxu0 0.0
    %151 = vmatprep.subr.mxu0 0.0
    %152 = vmatpush1.msra.mxu0 0.0
    %153 = vmatprep.subr.mxu0 0.0
    %154 = vmatpush1.msra.mxu0 0.0
    %155 = vmatprep.subr.mxu0 0.0
    %156 = vmatpush1.msra.mxu0 0.0
    %157 = vmatprep.subr.mxu0 0.0
    %158 = vmatpush1.msra.mxu0 0.0
    %159 = vmatprep.subr.mxu0 0.0
    %160 = vmatpush1.msra.mxu0 0.0
    %161 = vmatprep.subr.mxu0 0.0
    %162 = vmatpush1.msra.mxu0 0.0
    %163 = vmatprep.subr.mxu0 0.0
    %164 = vmatpush1.msra.mxu0 0.0
    %165 = vmatprep.subr.mxu0 0.0
    %166 = vmatpush1.msra.mxu0 0.0
    %167 = vmatprep.subr.mxu0 0.0
    %168 = vmatpush1.msra.mxu0 %v137
    %169 = vmatprep.subr.mxu0 0.0
    %170 = vmatpush1.msra.mxu0 %v136
    %171 = vmatprep.subr.mxu0 0.0
    %172 = vmatpush1.msra.mxu0 %v135
    %173 = vmatprep.subr.mxu0 0.0
    %174 = vmatpush1.msra.mxu0 %v134
    %175 = vmatprep.subr.mxu0 0.0
    %176 = vmatpush2.msra.mxu0 0.0
    %177 = vmatprep.subr.mxu0 0.0
    %178 = vmatpush2.msra.mxu0 0.0
    %179 = vmatprep.subr.mxu0 0.0
    %180 = vmatpush2.msra.mxu0 0.0
    %181 = vmatprep.subr.mxu0 0.0
    %182 = vmatpush2.msra.mxu0 0.0
    %183 = vmatprep.subr.mxu0 0.0
    %184 = vmatpush2.msra.mxu0 0.0
    %185 = vmatprep.subr.mxu0 0.0
    %186 = vmatpush2.msra.mxu0 0.0
    %187 = vmatprep.subr.mxu0 0.0
    %188 = vmatpush2.msra.mxu0 0.0
    %189 = vmatprep.subr.mxu0 0.0
    %190 = vmatpush2.msra.mxu0 0.0
    %191 = vmatprep.subr.mxu0 0.0
    %192 = vmatpush2.msra.mxu0 0.0
    %193 = vmatprep.subr.mxu0 0.0
    %194 = vmatpush2.msra.mxu0 0.0
    %195 = vmatprep.subr.mxu0 0.0
    %196 = vmatpush2.msra.mxu0 0.0
    %197 = vmatprep.subr.mxu0 0.0
    %198 = vmatpush2.msra.mxu0 0.0
    %199 = vmatprep.subr.mxu0 0.0
    %200 = vmatpush2.msra.mxu0 0.0
    %201 = vmatprep.subr.mxu0 0.0
    %202 = vmatpush2.msra.mxu0 0.0
    %203 = vmatprep.subr.mxu0 0.0
    %204 = vmatpush2.msra.mxu0 0.0
    %205 = vmatprep.subr.mxu0 0.0
    %206 = vmatpush2.msra.mxu0 0.0
    %207 = vmatprep.mubr.f32.mxu0 0.0
    %208 = vmatmul.mubr.f32.gmra.mxu0 %v141
    %v209 = vpop.f32.mrf.mxu0
    %v210 = vadd.f32 %v138, %v209
    %v211 = vpop.f32.mrf.mxu0
    %212 = vdwg.mxu0
    %vm213 = vcmask 401408
    %214 = vst.msk [vmem:[#allocation2] sm:$0x1] %vm213, %v210
    %v215 = vld [vmem:[%s6] sm:$0xff]
    %v216 = vld [vmem:[%s6 + $0x8] sm:$0xff]
    %v217 = vld [vmem:[%s6 + $0x10] sm:$0xff]
    %v218 = vld [vmem:[%s6 + $0x18] sm:$0xff]
    %v219 = vld [vmem:[%s8] sm:$0x1]
    %220 = vmatprep.subr.mxu0 0.0
    %221 = vmatpush1.msra.mxu0 0.0
    %222 = vmatprep.subr.mxu0 0.0
    %223 = vmatpush1.msra.mxu0 0.0
    %224 = vmatprep.subr.mxu0 0.0
    %225 = vmatpush1.msra.mxu0 0.0
    %226 = vmatprep.subr.mxu0 0.0
    %227 = vmatpush1.msra.mxu0 0.0
    %228 = vmatprep.subr.mxu0 0.0
    %229 = vmatpush1.msra.mxu0 0.0
    %230 = vmatprep.subr.mxu0 0.0
    %231 = vmatpush1.msra.mxu0 0.0
    %232 = vmatprep.subr.mxu0 0.0
    %233 = vmatpush1.msra.mxu0 0.0
    %234 = vmatprep.subr.mxu0 0.0
    %235 = vmatpush1.msra.mxu0 0.0
    %236 = vmatprep.subr.mxu0 0.0
    %237 = vmatpush1.msra.mxu0 0.0
    %238 = vmatprep.subr.mxu0 0.0
    %239 = vmatpush1.msra.mxu0 0.0
    %240 = vmatprep.subr.mxu0 0.0
    %241 = vmatpush1.msra.mxu0 0.0
    %242 = vmatprep.subr.mxu0 0.0
    %243 = vmatpush1.msra.mxu0 0.0
    %244 = vmatprep.subr.mxu0 0.0
    %245 = vmatpush1.msra.mxu0 %v218
    %246 = vmatprep.subr.mxu0 0.0
    %247 = vmatpush1.msra.mxu0 %v217
    %248 = vmatprep.subr.mxu0 0.0
    %249 = vmatpush1.msra.mxu0 %v216
    %250 = vmatprep.subr.mxu0 0.0
    %251 = vmatpush1.msra.mxu0 %v215
    %252 = vmatprep.subr.mxu0 0.0
    %253 = vmatpush2.msra.mxu0 0.0
    %254 = vmatprep.subr.mxu0 0.0
    %255 = vmatpush2.msra.mxu0 0.0
    %256 = vmatprep.subr.mxu0 0.0
    %257 = vmatpush2.msra.mxu0 0.0
    %258 = vmatprep.subr.mxu0 0.0
    %259 = vmatpush2.msra.mxu0 0.0
    %260 = vmatprep.subr.mxu0 0.0
    %261 = vmatpush2.msra.mxu0 0.0
    %262 = vmatprep.subr.mxu0 0.0
    %263 = vmatpush2.msra.mxu0 0.0
    %264 = vmatprep.subr.mxu0 0.0
    %265 = vmatpush2.msra.mxu0 0.0
    %266 = vmatprep.subr.mxu0 0.0
    %267 = vmatpush2.msra.mxu0 0.0
    %268 = vmatprep.subr.mxu0 0.0
    %269 = vmatpush2.msra.mxu0 0.0
    %270 = vmatprep.subr.mxu0 0.0
    %271 = vmatpush2.msra.mxu0 0.0
    %272 = vmatprep.subr.mxu0 0.0
    %273 = vmatpush2.msra.mxu0 0.0
    %274 = vmatprep.subr.mxu0 0.0
    %275 = vmatpush2.msra.mxu0 0.0
    %276 = vmatprep.subr.mxu0 0.0
    %277 = vmatpush2.msra.mxu0 0.0
    %278 = vmatprep.subr.mxu0 0.0
    %279 = vmatpush2.msra.mxu0 0.0
    %280 = vmatprep.subr.mxu0 0.0
    %281 = vmatpush2.msra.mxu0 0.0
    %282 = vmatprep.subr.mxu0 0.0
    %283 = vmatpush2.msra.mxu0 0.0
    %284 = vmatprep.mubr.f32.mxu0 0.0
    %285 = vmatmul.mubr.f32.gmra.mxu0 %v141
    %v286 = vpop.f32.mrf.mxu0
    %v287 = vadd.f32 %v219, %v286
    %v288 = vpop.f32.mrf.mxu0
    %289 = vdwg.mxu0
    %vm290 = vcmask 253952
    %291 = vst.msk [vmem:[#allocation3] sm:$0x1] %vm290, %v287
    %v292 = vld [vmem:[%s4] sm:$0xff]
    %v293 = vld [vmem:[%s4 + $0x8] sm:$0xff]
    %v294 = vld [vmem:[%s4 + $0x10] sm:$0xff]
    %v295 = vld [vmem:[%s4 + $0x18] sm:$0xff]
    %v296 = vld [vmem:[#allocation10] sm:$0xff]
    %v297 = vld [vmem:[#allocation10 + $0x8] sm:$0xff]
    %v298 = vld [vmem:[#allocation10 + $0x10] sm:$0xff]
    %v299 = vld [vmem:[#allocation10 + $0x18] sm:$0xff]
    %v300 = vld [vmem:[%s2] sm:$0xff]
    %v301 = vld [vmem:[%s2 + $0x8] sm:$0xff]
    %v302 = vld [vmem:[%s2 + $0x10] sm:$0xff]
    %v303 = vld [vmem:[%s2 + $0x18] sm:$0xff]
    %v304 = vld [vmem:[%s2 + $0x20] sm:$0xff]
    %v305 = vld [vmem:[%s2 + $0x28] sm:$0xff]
    %v306 = vld [vmem:[%s2 + $0x30] sm:$0x3]
    %v307 = vld [vmem:[#allocation11] sm:$0xff]
    %v308 = vld [vmem:[#allocation11 + $0x8] sm:$0xff]
    %v309 = vld [vmem:[#allocation11 + $0x10] sm:$0xff]
    %v310 = vld [vmem:[#allocation11 + $0x18] sm:$0xff]
    %v311 = vld [vmem:[#allocation13] sm:$0xff]
    %v312 = vld [vmem:[#allocation13 + $0x8] sm:$0xff]
    %v313 = vld [vmem:[#allocation13 + $0x10] sm:$0xff]
    %v314 = vld [vmem:[#allocation13 + $0x18] sm:$0xff]
    %v315 = vld [vmem:[%s11] sm:$0x1]
    %v316 = vld [vmem:[%s12] sm:$0x1]
    %v317 = vld [vmem:[#allocation5] sm:$0x1]
    %v318 = vld [vmem:[#allocation2] sm:$0x1]
    %v320 = vsel %vm139, %v317, 0
    %322 = vmatprep.subr.mxu0 0.0
    %323 = vmatpush1.msra.mxu0 0.0
    %324 = vmatprep.subr.mxu0 0.0
    %325 = vmatpush1.msra.mxu0 0.0
    %326 = vmatprep.subr.mxu0 0.0
    %327 = vmatpush1.msra.mxu0 0.0
    %328 = vmatprep.subr.mxu0 0.0
    %329 = vmatpush1.msra.mxu0 0.0
    %330 = vmatprep.subr.mxu0 0.0
    %331 = vmatpush1.msra.mxu0 0.0
    %332 = vmatprep.subr.mxu0 0.0
    %333 = vmatpush1.msra.mxu0 0.0
    %334 = vmatprep.subr.mxu0 0.0
    %335 = vmatpush1.msra.mxu0 0.0
    %336 = vmatprep.subr.mxu0 0.0
    %337 = vmatpush1.msra.mxu0 0.0
    %338 = vmatprep.subr.mxu0 0.0
    %339 = vmatpush1.msra.mxu0 0.0
    %340 = vmatprep.subr.mxu0 0.0
    %341 = vmatpush1.msra.mxu0 0.0
    %342 = vmatprep.subr.mxu0 0.0
    %343 = vmatpush1.msra.mxu0 0.0
    %344 = vmatprep.subr.mxu0 0.0
    %345 = vmatpush1.msra.mxu0 0.0
    %346 = vmatprep.subr.mxu0 0.0
    %347 = vmatpush1.msra.mxu0 %v295
    %348 = vmatprep.subr.mxu0 0.0
    %349 = vmatpush1.msra.mxu0 %v294
    %350 = vmatprep.subr.mxu0 0.0
    %351 = vmatpush1.msra.mxu0 %v293
    %352 = vmatprep.subr.mxu0 0.0
    %353 = vmatpush1.msra.mxu0 %v292
    %354 = vmatprep.subr.mxu0 0.0
    %355 = vmatpush2.msra.mxu0 0.0
    %356 = vmatprep.subr.mxu0 0.0
    %357 = vmatpush2.msra.mxu0 0.0
    %358 = vmatprep.subr.mxu0 0.0
    %359 = vmatpush2.msra.mxu0 0.0
    %360 = vmatprep.subr.mxu0 0.0
    %361 = vmatpush2.msra.mxu0 0.0
    %362 = vmatprep.subr.mxu0 0.0
    %363 = vmatpush2.msra.mxu0 0.0
    %364 = vmatprep.subr.mxu0 0.0
    %365 = vmatpush2.msra.mxu0 0.0
    %366 = vmatprep.subr.mxu0 0.0
    %367 = vmatpush2.msra.mxu0 0.0
    %368 = vmatprep.subr.mxu0 0.0
    %369 = vmatpush2.msra.mxu0 0.0
    %370 = vmatprep.subr.mxu0 0.0
    %371 = vmatpush2.msra.mxu0 0.0
    %372 = vmatprep.subr.mxu0 0.0
    %373 = vmatpush2.msra.mxu0 0.0
    %374 = vmatprep.subr.mxu0 0.0
    %375 = vmatpush2.msra.mxu0 0.0
    %376 = vmatprep.subr.mxu0 0.0
    %377 = vmatpush2.msra.mxu0 0.0
    %378 = vmatprep.subr.mxu0 0.0
    %379 = vmatpush2.msra.mxu0 0.0
    %380 = vmatprep.subr.mxu0 0.0
    %381 = vmatpush2.msra.mxu0 0.0
    %382 = vmatprep.subr.mxu0 0.0
    %383 = vmatpush2.msra.mxu0 0.0
    %384 = vmatprep.subr.mxu0 0.0
    %385 = vmatpush2.msra.mxu0 0.0
    %386 = vmatprep.mubr.f32.mxu0 0.0
    %387 = vmatmul.mubr.f32.gmra.mxu0 %v320
    %v388 = vpop.f32.mrf.mxu0
    %v389 = vadd.f32 0.0, %v388
    %v390 = vpop.f32.mrf.mxu0
    %391 = vdwg.mxu0
    %v392 = vadd.f32 %v318, %v389
    %v393 = vsel %vm213, %v392, -inf
    %394 = vmax.xlane.f32.xlu0 %v393
    %v395 = vpop.xlane.xlu0 %394
    %v396 = vsub.f32 %v392, %v395
    %v397 = vmul.f32 %v396, 1.442695
    %v398 = vpow.pop %v397
    %v399 = vsel %vm213, %v398, 0.0
    %400 = vadd.xlane.f32.xlu0 %v399
    %v401 = vpop.xlane.xlu0 %400
    %v402 = vrcp.pop %v401
    %v403 = vmul.f32 %v398, %v402
    %vm404 = vcmask 408576
    %v406 = vsel %vm404, %v403, 0
    %vm408 = vcmask 1041408
    %v410 = vsel %vm408, %v306, 0
    %412 = vmatprep.subr.mxu0 0.0
    %413 = vmatpush1.msra.mxu0 0.0
    %414 = vmatprep.subr.mxu0 0.0
    %415 = vmatpush1.msra.mxu0 0.0
    %416 = vmatprep.subr.mxu0 0.0
    %417 = vmatpush1.msra.mxu0 0.0
    %418 = vmatprep.subr.mxu0 0.0
    %419 = vmatpush1.msra.mxu0 0.0
    %420 = vmatprep.subr.mxu0 0.0
    %421 = vmatpush1.msra.mxu0 0.0
    %422 = vmatprep.subr.mxu0 0.0
    %423 = vmatpush1.msra.mxu0 0.0
    %424 = vmatprep.subr.mxu0 0.0
    %425 = vmatpush1.msra.mxu0 0.0
    %426 = vmatprep.subr.mxu0 0.0
    %427 = vmatpush1.msra.mxu0 0.0
    %428 = vmatprep.subr.mxu0 0.0
    %429 = vmatpush1.msra.mxu0 0.0
    %430 = vmatprep.subr.mxu0 0.0
    %431 = vmatpush1.msra.mxu0 %v410
    %432 = vmatprep.subr.mxu0 0.0
    %433 = vmatpush1.msra.mxu0 %v305
    %434 = vmatprep.subr.mxu0 0.0
    %435 = vmatpush1.msra.mxu0 %v304
    %436 = vmatprep.subr.mxu0 0.0
    %437 = vmatpush1.msra.mxu0 %v303
    %438 = vmatprep.subr.mxu0 0.0
    %439 = vmatpush1.msra.mxu0 %v302
    %440 = vmatprep.subr.mxu0 0.0
    %441 = vmatpush1.msra.mxu0 %v301
    %442 = vmatprep.subr.mxu0 0.0
    %443 = vmatpush1.msra.mxu0 %v300
    %444 = vmatprep.subr.mxu0 0.0
    %445 = vmatpush2.msra.mxu0 0.0
    %446 = vmatprep.subr.mxu0 0.0
    %447 = vmatpush2.msra.mxu0 0.0
    %448 = vmatprep.subr.mxu0 0.0
    %449 = vmatpush2.msra.mxu0 0.0
    %450 = vmatprep.subr.mxu0 0.0
    %451 = vmatpush2.msra.mxu0 0.0
    %452 = vmatprep.subr.mxu0 0.0
    %453 = vmatpush2.msra.mxu0 0.0
    %454 = vmatprep.subr.mxu0 0.0
    %455 = vmatpush2.msra.mxu0 0.0
    %456 = vmatprep.subr.mxu0 0.0
    %457 = vmatpush2.msra.mxu0 0.0
    %458 = vmatprep.subr.mxu0 0.0
    %459 = vmatpush2.msra.mxu0 0.0
    %460 = vmatprep.subr.mxu0 0.0
    %461 = vmatpush2.msra.mxu0 0.0
    %462 = vmatprep.subr.mxu0 0.0
    %463 = vmatpush2.msra.mxu0 0.0
    %464 = vmatprep.subr.mxu0 0.0
    %465 = vmatpush2.msra.mxu0 0.0
    %466 = vmatprep.subr.mxu0 0.0
    %467 = vmatpush2.msra.mxu0 0.0
    %468 = vmatprep.subr.mxu0 0.0
    %469 = vmatpush2.msra.mxu0 0.0
    %470 = vmatprep.subr.mxu0 0.0
    %471 = vmatpush2.msra.mxu0 0.0
    %472 = vmatprep.subr.mxu0 0.0
    %473 = vmatpush2.msra.mxu0 0.0
    %474 = vmatprep.subr.mxu0 0.0
    %475 = vmatpush2.msra.mxu0 0.0
    %476 = vmatprep.mubr.f32.mxu0 0.0
    %477 = vmatmul.mubr.f32.gmra.mxu0 %v406
    %v478 = vpop.f32.mrf.mxu0
    %v479 = vadd.f32 0.0, %v478
    %v480 = vpop.f32.mrf.mxu0
    %481 = vdwg.mxu0
    %v482 = vld [vmem:[#allocation3] sm:$0x1]
    %v484 = vsel %vm139, %v479, 0
    %486 = vmatprep.subr.mxu0 0.0
    %487 = vmatpush1.msra.mxu0 0.0
    %488 = vmatprep.subr.mxu0 0.0
    %489 = vmatpush1.msra.mxu0 0.0
    %490 = vmatprep.subr.mxu0 0.0
    %491 = vmatpush1.msra.mxu0 0.0
    %492 = vmatprep.subr.mxu0 0.0
    %493 = vmatpush1.msra.mxu0 0.0
    %494 = vmatprep.subr.mxu0 0.0
    %495 = vmatpush1.msra.mxu0 0.0
    %496 = vmatprep.subr.mxu0 0.0
    %497 = vmatpush1.msra.mxu0 0.0
    %498 = vmatprep.subr.mxu0 0.0
    %499 = vmatpush1.msra.mxu0 0.0
    %500 = vmatprep.subr.mxu0 0.0
    %501 = vmatpush1.msra.mxu0 0.0
    %502 = vmatprep.subr.mxu0 0.0
    %503 = vmatpush1.msra.mxu0 0.0
    %504 = vmatprep.subr.mxu0 0.0
    %505 = vmatpush1.msra.mxu0 0.0
    %506 = vmatprep.subr.mxu0 0.0
    %507 = vmatpush1.msra.mxu0 0.0
    %508 = vmatprep.subr.mxu0 0.0
    %509 = vmatpush1.msra.mxu0 0.0
    %510 = vmatprep.subr.mxu0 0.0
    %511 = vmatpush1.msra.mxu0 %v299
    %512 = vmatprep.subr.mxu0 0.0
    %513 = vmatpush1.msra.mxu0 %v298
    %514 = vmatprep.subr.mxu0 0.0
    %515 = vmatpush1.msra.mxu0 %v297
    %516 = vmatprep.subr.mxu0 0.0
    %517 = vmatpush1.msra.mxu0 %v296
    %518 = vmatprep.subr.mxu0 0.0
    %519 = vmatpush2.msra.mxu0 0.0
    %520 = vmatprep.subr.mxu0 0.0
    %521 = vmatpush2.msra.mxu0 0.0
    %522 = vmatprep.subr.mxu0 0.0
    %523 = vmatpush2.msra.mxu0 0.0
    %524 = vmatprep.subr.mxu0 0.0
    %525 = vmatpush2.msra.mxu0 0.0
    %526 = vmatprep.subr.mxu0 0.0
    %527 = vmatpush2.msra.mxu0 0.0
    %528 = vmatprep.subr.mxu0 0.0
    %529 = vmatpush2.msra.mxu0 0.0
    %530 = vmatprep.subr.mxu0 0.0
    %531 = vmatpush2.msra.mxu0 0.0
    %532 = vmatprep.subr.mxu0 0.0
    %533 = vmatpush2.msra.mxu0 0.0
    %534 = vmatprep.subr.mxu0 0.0
    %535 = vmatpush2.msra.mxu0 0.0
    %536 = vmatprep.subr.mxu0 0.0
    %537 = vmatpush2.msra.mxu0 0.0
    %538 = vmatprep.subr.mxu0 0.0
    %539 = vmatpush2.msra.mxu0 0.0
    %540 = vmatprep.subr.mxu0 0.0
    %541 = vmatpush2.msra.mxu0 0.0
    %542 = vmatprep.subr.mxu0 0.0
    %543 = vmatpush2.msra.mxu0 0.0
    %544 = vmatprep.subr.mxu0 0.0
    %545 = vmatpush2.msra.mxu0 0.0
    %546 = vmatprep.subr.mxu0 0.0
    %547 = vmatpush2.msra.mxu0 0.0
    %548 = vmatprep.subr.mxu0 0.0
    %549 = vmatpush2.msra.mxu0 0.0
    %550 = vmatprep.mubr.f32.mxu0 0.0
    %551 = vmatmul.mubr.f32.gmra.mxu0 %v484
    %v552 = vpop.f32.mrf.mxu0
    %v553 = vadd.f32 0.0, %v552
    %v554 = vpop.f32.mrf.mxu0
    %555 = vdwg.mxu0
    %v556 = vadd.f32 %v482, %v553
    %v557 = vmax.f32 %v556, 0.0
    %v559 = vsel %vm139, %v557, 0
    %561 = vmatprep.subr.mxu0 0.0
    %562 = vmatpush1.msra.mxu0 0.0
    %563 = vmatprep.subr.mxu0 0.0
    %564 = vmatpush1.msra.mxu0 0.0
    %565 = vmatprep.subr.mxu0 0.0
    %566 = vmatpush1.msra.mxu0 0.0
    %567 = vmatprep.subr.mxu0 0.0
    %568 = vmatpush1.msra.mxu0 0.0
    %569 = vmatprep.subr.mxu0 0.0
    %570 = vmatpush1.msra.mxu0 0.0
    %571 = vmatprep.subr.mxu0 0.0
    %572 = vmatpush1.msra.mxu0 0.0
    %573 = vmatprep.subr.mxu0 0.0
    %574 = vmatpush1.msra.mxu0 0.0
    %575 = vmatprep.subr.mxu0 0.0
    %576 = vmatpush1.msra.mxu0 0.0
    %577 = vmatprep.subr.mxu0 0.0
    %578 = vmatpush1.msra.mxu0 0.0
    %579 = vmatprep.subr.mxu0 0.0
    %580 = vmatpush1.msra.mxu0 0.0
    %581 = vmatprep.subr.mxu0 0.0
    %582 = vmatpush1.msra.mxu0 0.0
    %583 = vmatprep.subr.mxu0 0.0
    %584 = vmatpush1.msra.mxu0 0.0
    %585 = vmatprep.subr.mxu0 0.0
    %586 = vmatpush1.msra.mxu0 %v310
    %587 = vmatprep.subr.mxu0 0.0
    %588 = vmatpush1.msra.mxu0 %v309
    %589 = vmatprep.subr.mxu0 0.0
    %590 = vmatpush1.msra.mxu0 %v308
    %591 = vmatprep.subr.mxu0 0.0
    %592 = vmatpush1.msra.mxu0 %v307
    %593 = vmatprep.subr.mxu0 0.0
    %594 = vmatpush2.msra.mxu0 0.0
    %595 = vmatprep.subr.mxu0 0.0
    %596 = vmatpush2.msra.mxu0 0.0
    %597 = vmatprep.subr.mxu0 0.0
    %598 = vmatpush2.msra.mxu0 0.0
    %599 = vmatprep.subr.mxu0 0.0
    %600 = vmatpush2.msra.mxu0 0.0
    %601 = vmatprep.subr.mxu0 0.0
    %602 = vmatpush2.msra.mxu0 0.0
    %603 = vmatprep.subr.mxu0 0.0
    %604 = vmatpush2.msra.mxu0 0.0
    %605 = vmatprep.subr.mxu0 0.0
    %606 = vmatpush2.msra.mxu0 0.0
    %607 = vmatprep.subr.mxu0 0.0
    %608 = vmatpush2.msra.mxu0 0.0
    %609 = vmatprep.subr.mxu0 0.0
    %610 = vmatpush2.msra.mxu0 0.0
    %611 = vmatprep.subr.mxu0 0.0
    %612 = vmatpush2.msra.mxu0 0.0
    %613 = vmatprep.subr.mxu0 0.0
    %614 = vmatpush2.msra.mxu0 0.0
    %615 = vmatprep.subr.mxu0 0.0
    %616 = vmatpush2.msra.mxu0 0.0
    %617 = vmatprep.subr.mxu0 0.0
    %618 = vmatpush2.msra.mxu0 0.0
    %619 = vmatprep.subr.mxu0 0.0
    %620 = vmatpush2.msra.mxu0 0.0
    %621 = vmatprep.subr.mxu0 0.0
    %622 = vmatpush2.msra.mxu0 0.0
    %623 = vmatprep.subr.mxu0 0.0
    %624 = vmatpush2.msra.mxu0 0.0
    %625 = vmatprep.mubr.f32.mxu0 0.0
    %626 = vmatmul.mubr.f32.gmra.mxu0 %v559
    %v627 = vpop.f32.mrf.mxu0
    %v628 = vadd.f32 %v315, %v627
    %v629 = vpop.f32.mrf.mxu0
    %630 = vdwg.mxu0
    %631 = vmatprep.subr.mxu0 0.0
    %632 = vmatpush1.msra.mxu0 0.0
    %633 = vmatprep.subr.mxu0 0.0
    %634 = vmatpush1.msra.mxu0 0.0
    %635 = vmatprep.subr.mxu0 0.0
    %636 = vmatpush1.msra.mxu0 0.0
    %637 = vmatprep.subr.mxu0 0.0
    %638 = vmatpush1.msra.mxu0 0.0
    %639 = vmatprep.subr.mxu0 0.0
    %640 = vmatpush1.msra.mxu0 0.0
    %641 = vmatprep.subr.mxu0 0.0
    %642 = vmatpush1.msra.mxu0 0.0
    %643 = vmatprep.subr.mxu0 0.0
    %644 = vmatpush1.msra.mxu0 0.0
    %645 = vmatprep.subr.mxu0 0.0
    %646 = vmatpush1.msra.mxu0 0.0
    %647 = vmatprep.subr.mxu0 0.0
    %648 = vmatpush1.msra.mxu0 0.0
    %649 = vmatprep.subr.mxu0 0.0
    %650 = vmatpush1.msra.mxu0 0.0
    %651 = vmatprep.subr.mxu0 0.0
    %652 = vmatpush1.msra.mxu0 0.0
    %653 = vmatprep.subr.mxu0 0.0
    %654 = vmatpush1.msra.mxu0 0.0
    %655 = vmatprep.subr.mxu0 0.0
    %656 = vmatpush1.msra.mxu0 %v314
    %657 = vmatprep.subr.mxu0 0.0
    %658 = vmatpush1.msra.mxu0 %v313
    %659 = vmatprep.subr.mxu0 0.0
    %660 = vmatpush1.msra.mxu0 %v312
    %661 = vmatprep.subr.mxu0 0.0
    %662 = vmatpush1.msra.mxu0 %v311
    %663 = vmatprep.subr.mxu0 0.0
    %664 = vmatpush2.msra.mxu0 0.0
    %665 = vmatprep.subr.mxu0 0.0
    %666 = vmatpush2.msra.mxu0 0.0
    %667 = vmatprep.subr.mxu0 0.0
    %668 = vmatpush2.msra.mxu0 0.0
    %669 = vmatprep.subr.mxu0 0.0
    %670 = vmatpush2.msra.mxu0 0.0
    %671 = vmatprep.subr.mxu0 0.0
    %672 = vmatpush2.msra.mxu0 0.0
    %673 = vmatprep.subr.mxu0 0.0
    %674 = vmatpush2.msra.mxu0 0.0
    %675 = vmatprep.subr.mxu0 0.0
    %676 = vmatpush2.msra.mxu0 0.0
    %677 = vmatprep.subr.mxu0 0.0
    %678 = vmatpush2.msra.mxu0 0.0
    %679 = vmatprep.subr.mxu0 0.0
    %680 = vmatpush2.msra.mxu0 0.0
    %681 = vmatprep.subr.mxu0 0.0
    %682 = vmatpush2.msra.mxu0 0.0
    %683 = vmatprep.subr.mxu0 0.0
    %684 = vmatpush2.msra.mxu0 0.0
    %685 = vmatprep.subr.mxu0 0.0
    %686 = vmatpush2.msra.mxu0 0.0
    %687 = vmatprep.subr.mxu0 0.0
    %688 = vmatpush2.msra.mxu0 0.0
    %689 = vmatprep.subr.mxu0 0.0
    %690 = vmatpush2.msra.mxu0 0.0
    %691 = vmatprep.subr.mxu0 0.0
    %692 = vmatpush2.msra.mxu0 0.0
    %693 = vmatprep.subr.mxu0 0.0
    %694 = vmatpush2.msra.mxu0 0.0
    %695 = vmatprep.mubr.f32.mxu0 0.0
    %696 = vmatmul.mubr.f32.gmra.mxu0 %v320
    %v697 = vpop.f32.mrf.mxu0
    %v698 = vadd.f32 %v316, %v697
    %v699 = vpop.f32.mrf.mxu0
    %700 = vdwg.mxu0
    %v701 = vadd.f32 %v628, %v698
    %v702 = vxor.u32 %v701, 2147483648
    %v703 = vmul.f32 %v702, 1.442695
    %v704 = vpow.pop %v703
    %v705 = vadd.f32 %v704, 1.0
    %v706 = vrcp.pop %v705
    %v707 = vmul.f32 1.0, %v706
    %709 = vrot.lane.b32.xlu0 %v698, 64
    %v710 = vpop.permute.xlu0 %709
    %v712 = vmul.f32 %v707, %v710
    %714 = vrot.lane.b32.xlu0 %v712, 64
    %v715 = vpop.permute.xlu0 %714
    %v717 = vadd.f32 %v628, %v715
    %v718 = vtanh.pop %v717
    %v719 = vsub.f32 1.0, %v707
    %721 = vrot.lane.b32.xlu0 %v718, 96
    %v722 = vpop.permute.xlu0 %721
    %v724 = vmul.f32 %v719, %v722
    %v725 = vlaneseq
    %v726 = vshrl.u32 %v725, 7
    %v727 = vsub.s32 0, %v726
    %v728 = vrot.slane %v317, %v727
    %729 = vrot.lane.b32.xlu0 %v728, 32
    %v730 = vpop.permute.xlu0 %729
    %v732 = vmul.f32 %v707, %v730
    %v733 = vadd.f32 %v724, %v732
    %734 = vst.msk [vmem:[#allocation17] sm:$0x1] %vm213, %v403
    %736 = vrot.lane.b32.xlu0 %v733, 96
    %v737 = vpop.permute.xlu0 %736
    %739 = vst.msk [vmem:[#allocation4] sm:$0x1] %vm290, %v737
    %740 = vst.msk [vmem:[#allocation19] sm:$0x1] %vm290, %v737
    %v741 = vld [vmem:[#allocation4] sm:$0x1]
    %v742 = vld [vmem:[#allocation14] sm:$0xff]
    %v743 = vld [vmem:[#allocation14 + $0x8] sm:$0xff]
    %v744 = vld [vmem:[#allocation14 + $0x10] sm:$0xff]
    %v745 = vld [vmem:[#allocation14 + $0x18] sm:$0xff]
    %v746 = vld [vmem:[%s14] sm:$0x1]
    %v748 = vsel %vm139, %v741, 0
    %750 = vmatprep.subr.mxu0 0.0
    %751 = vmatpush1.msra.mxu0 0.0
    %752 = vmatprep.subr.mxu0 0.0
    %753 = vmatpush1.msra.mxu0 0.0
    %754 = vmatprep.subr.mxu0 0.0
    %755 = vmatpush1.msra.mxu0 0.0
    %756 = vmatprep.subr.mxu0 0.0
    %757 = vmatpush1.msra.mxu0 0.0
    %758 = vmatprep.subr.mxu0 0.0
    %759 = vmatpush1.msra.mxu0 0.0
    %760 = vmatprep.subr.mxu0 0.0
    %761 = vmatpush1.msra.mxu0 0.0
    %762 = vmatprep.subr.mxu0 0.0
    %763 = vmatpush1.msra.mxu0 0.0
    %764 = vmatprep.subr.mxu0 0.0
    %765 = vmatpush1.msra.mxu0 0.0
    %766 = vmatprep.subr.mxu0 0.0
    %767 = vmatpush1.msra.mxu0 0.0
    %768 = vmatprep.subr.mxu0 0.0
    %769 = vmatpush1.msra.mxu0 0.0
    %770 = vmatprep.subr.mxu0 0.0
    %771 = vmatpush1.msra.mxu0 0.0
    %772 = vmatprep.subr.mxu0 0.0
    %773 = vmatpush1.msra.mxu0 0.0
    %774 = vmatprep.subr.mxu0 0.0
    %775 = vmatpush1.msra.mxu0 %v745
    %776 = vmatprep.subr.mxu0 0.0
    %777 = vmatpush1.msra.mxu0 %v744
    %778 = vmatprep.subr.mxu0 0.0
    %779 = vmatpush1.msra.mxu0 %v743
    %780 = vmatprep.subr.mxu0 0.0
    %781 = vmatpush1.msra.mxu0 %v742
    %782 = vmatprep.subr.mxu0 0.0
    %783 = vmatpush2.msra.mxu0 0.0
    %784 = vmatprep.subr.mxu0 0.0
    %785 = vmatpush2.msra.mxu0 0.0
    %786 = vmatprep.subr.mxu0 0.0
    %787 = vmatpush2.msra.mxu0 0.0
    %788 = vmatprep.subr.mxu0 0.0
    %789 = vmatpush2.msra.mxu0 0.0
    %790 = vmatprep.subr.mxu0 0.0
    %791 = vmatpush2.msra.mxu0 0.0
    %792 = vmatprep.subr.mxu0 0.0
    %793 = vmatpush2.msra.mxu0 0.0
    %794 = vmatprep.subr.mxu0 0.0
    %795 = vmatpush2.msra.mxu0 0.0
    %796 = vmatprep.subr.mxu0 0.0
    %797 = vmatpush2.msra.mxu0 0.0
    %798 = vmatprep.subr.mxu0 0.0
    %799 = vmatpush2.msra.mxu0 0.0
    %800 = vmatprep.subr.mxu0 0.0
    %801 = vmatpush2.msra.mxu0 0.0
    %802 = vmatprep.subr.mxu0 0.0
    %803 = vmatpush2.msra.mxu0 0.0
    %804 = vmatprep.subr.mxu0 0.0
    %805 = vmatpush2.msra.mxu0 0.0
    %806 = vmatprep.subr.mxu0 0.0
    %807 = vmatpush2.msra.mxu0 0.0
    %808 = vmatprep.subr.mxu0 0.0
    %809 = vmatpush2.msra.mxu0 0.0
    %810 = vmatprep.subr.mxu0 0.0
    %811 = vmatpush2.msra.mxu0 0.0
    %812 = vmatprep.subr.mxu0 0.0
    %813 = vmatpush2.msra.mxu0 0.0
    %814 = vmatprep.mubr.f32.mxu0 0.0
    %815 = vmatmul.mubr.f32.gmra.mxu0 %v748
    %v816 = vpop.f32.mrf.mxu0
    %v817 = vadd.f32 %v746, %v816
    %v818 = vpop.f32.mrf.mxu0
    %819 = vdwg.mxu0
    %vm820 = vcmask 385024
    %v821 = vsel %vm820, %v817, -inf
    %822 = vmax.xlane.f32.xlu0 %v821
    %v823 = vpop.xlane.xlu0 %822
    %v824 = vsub.f32 %v817, %v823
    %v825 = vmul.f32 %v824, 1.442695
    %v826 = vpow.pop %v825
    %v827 = vsel %vm820, %v826, 0.0
    %828 = vadd.xlane.f32.xlu0 %v827
    %v829 = vpop.xlane.xlu0 %828
    %v830 = vlog2.pop %v829
    %v831 = vmul.f32 %v830, 0.6931472
    %v832 = vsub.f32 %v824, %v831
    %833 = vst.msk [vmem:[#allocation16] sm:$0x1] %vm820, %v832
    // Predicated region
    $region86: #{tpu_custom_call.1} parent=1 // pred_check
      _
    $region87: #{tpu_custom_call.1} parent=1 // pred_check_branch
      %835 = sbr.rel (0) target = $region89
    $region88: #{tpu_custom_call.1} parent=1 // pred_region
      %s837 = ssub.s32 16, 16
      %838 = vsyncadd [#allocation7], %s837
      %s840 = sshll.u32 [#allocation16], 4
      %s841 = int_to_ptr.vmem [resolvable:$true] %s840
      %843 = dma.vmem_to_hbm [thread:$0]  %s841, 16, %s15, [#allocation7]
    $region89: #{tpu_custom_call.1} parent=1 // pred_fallthru
      _
    // Predicated region
    $region90: #{tpu_custom_call.1} parent=1 // pred_check
      _
    $region91: #{tpu_custom_call.1} parent=1 // pred_check_branch
      %845 = sbr.rel (0) target = $region93
    $region92: #{tpu_custom_call.1} parent=1 // pred_region
      %s847 = ssub.s32 16, 16
      %848 = vsyncadd [#allocation18], %s847
      %s850 = sshll.u32 [#allocation17], 4
      %s851 = int_to_ptr.vmem [resolvable:$true] %s850
      %853 = dma.vmem_to_hbm [thread:$0]  %s851, 16, %s16, [#allocation18]
    $region93: #{tpu_custom_call.1} parent=1 // pred_fallthru
      _
    // Predicated region
    $region94: #{tpu_custom_call.1} parent=1 // pred_check
      _
    $region95: #{tpu_custom_call.1} parent=1 // pred_check_branch
      %855 = sbr.rel (0) target = $region97
    $region96: #{tpu_custom_call.1} parent=1 // pred_region
      %s857 = ssub.s32 16, 16
      %858 = vsyncadd [#allocation18], %s857
      %s860 = sshll.u32 [#allocation19], 4
      %s861 = int_to_ptr.vmem [resolvable:$true] %s860
      %863 = dma.vmem_to_hbm [thread:$0]  %s861, 16, %s17, [#allocation18]
    $region97: #{tpu_custom_call.1} parent=1 // pred_fallthru
      _
    // Predicated region
    $region98: #{tpu_custom_call.1} parent=1 // pred_check
      _
    $region99: #{tpu_custom_call.1} parent=1 // pred_check_branch
      %865 = sbr.rel (0) target = $region101
    $region100: #{tpu_custom_call.1} parent=1 // pred_region
      %866 = dma.done [#allocation7], 16
    $region101: #{tpu_custom_call.1} parent=1 // pred_fallthru
      _
    // Predicated region
    $region102: #{tpu_custom_call.1} parent=1 // pred_check
      _
    $region103: #{tpu_custom_call.1} parent=1 // pred_check_branch
      %868 = sbr.rel (0) target = $region105
    $region104: #{tpu_custom_call.1} parent=1 // pred_region
      %869 = dma.done [#allocation18], 16
    $region105: #{tpu_custom_call.1} parent=1 // pred_fallthru
      _
    // Predicated region
    $region106: #{tpu_custom_call.1} parent=1 // pred_check
      _
    $region107: #{tpu_custom_call.1} parent=1 // pred_check_branch
      %871 = sbr.rel (0) target = $region109
    $region108: #{tpu_custom_call.1} parent=1 // pred_region
      %872 = dma.done [#allocation18], 16
    $region109: #{tpu_custom_call.1} parent=1 // pred_fallthru
      _
    %873 = vsyncpa [#allocation6], 1
    %874 = vsyncpa [#allocation9], 1
    %875 = vsyncpa [#allocation12], 1
    %876 = vsyncpa [#allocation15], 1
    %877 = vsyncpa [#allocation7], 1
    %878 = vsyncpa [#allocation18], 1

</llo_original>
